<compile_context>
chip_gen: v5e
topology: v5e:2x2
jax: 0.10.0
libtpu: 0.0.40
codegen_flags: <defaults>
</compile_context>

<pallas_src>
import jax
import jax.numpy as jnp
from jax.experimental import pallas as pl
from jax.experimental.pallas import tpu as pltpu


def _copy_kernel(x_ref, o_ref):
    # Pure identity copy — the only "compute" a view op can have.
    o_ref[...] = x_ref[...]


def unsafe_view_expand(a: jax.Array) -> jax.Array:
    """Equivalent of `torch.ops.aten._unsafe_view(a, [2, 3, 4])` for a [6, 4] f32 array."""
    assert a.ndim == 2 and a.shape == (6, 4), a.shape
    rows, cols = a.shape
    nbytes = a.size * jnp.dtype(a.dtype).itemsize

    copied = pl.pallas_call(
        _copy_kernel,
        out_shape=jax.ShapeDtypeStruct((rows, cols), a.dtype),
        grid_spec=pl.GridSpec(
            grid=(1,),
            # Full-array block: block_shape equals the array dims, so there is
            # no (8,128) padding concern and no tiling for 24 elements.
            in_specs=[pl.BlockSpec((rows, cols), lambda i: (0, 0))],
            out_specs=pl.BlockSpec((rows, cols), lambda i: (0, 0)),
        ),
        compiler_params=pltpu.CompilerParams(
            dimension_semantics=("parallel",),
        ),
        # Advisory hint: zero flops, pure HBM read+write of the buffer.
        cost_estimate=pl.CostEstimate(
            flops=0, transcendentals=0, bytes_accessed=2 * nbytes
        ),
    )(a)

    # _unsafe_view: contiguous row-major reinterpretation [6,4] -> [2,3,4].
    # Metadata-only, no data movement — same as torch.
    return jnp.reshape(copied, (2, 3, 4))


if __name__ == "__main__":
    key = jax.random.PRNGKey(0)
    a = jax.random.normal(key, (6, 4), dtype=jnp.float32)

    out = unsafe_view_expand(a)
    out = jax.block_until_ready(out)

    # Verify semantics against the reference (pure row-major reshape).
    expected = jnp.reshape(a, (2, 3, 4))
    assert out.shape == (2, 3, 4), out.shape
    assert out.dtype == jnp.float32, out.dtype
    assert bool(jnp.array_equal(out, expected))

    print("KERNEL_OK")
</pallas_src>

<mosaic_0001>
module attributes {stable_mosaic.version = 11 : i64} {
  func.func @_copy_kernel(%arg0: i32, %arg1: memref<6x4xf32, #tpu.memory_space<vmem>>, %arg2: memref<6x4xf32, #tpu.memory_space<vmem>>) attributes {dimension_semantics = [#tpu.dimension_semantics<parallel>], iteration_bounds = array<i64: 1>, scalar_prefetch = 0 : i64, scratch_operands = 0 : i64, tpu.core_type = #tpu.core_type<tc>, window_params = [{pipeline_mode = #tpu.pipeline_mode<synchronous>, transform_indices = @transform_0, window_bounds = array<i64: 6, 4>}, {pipeline_mode = #tpu.pipeline_mode<synchronous>, transform_indices = @transform_1, window_bounds = array<i64: 6, 4>}]} {
    %c0 = arith.constant 0 : index
    %c0_0 = arith.constant 0 : index
    %0 = vector.load %arg1[%c0, %c0_0] : memref<6x4xf32, #tpu.memory_space<vmem>>, vector<6x4xf32>
    %c0_1 = arith.constant 0 : index
    %c0_2 = arith.constant 0 : index
    %1 = vector.load %arg2[%c0_1, %c0_2] : memref<6x4xf32, #tpu.memory_space<vmem>>, vector<6x4xf32>
    tpu.vector_store %arg2[%c0_1, %c0_2], %0 {strides = array<i32>} : memref<6x4xf32, #tpu.memory_space<vmem>>, vector<6x4xf32>,
    return
  }
  func.func @transform_0(%arg0: i32) -> (i32, i32) {
    %c0_i32 = arith.constant 0 : i32
    %c0_i32_0 = arith.constant 0 : i32
    %c0_i32_1 = arith.constant 0 : i32
    return %c0_i32, %c0_i32_0 : i32, i32
  }
  func.func @transform_1(%arg0: i32) -> (i32, i32) {
    %c0_i32 = arith.constant 0 : i32
    %c0_i32_0 = arith.constant 0 : i32
    %c0_i32_1 = arith.constant 0 : i32
    return %c0_i32, %c0_i32_0 : i32, i32
  }
}

</mosaic_0001>

<llo_original>
// kernel: tpu_custom_call.1
$region0: #{tpu_custom_call.1}
  #allocation0 [shape = 'u32[]', space=smem, size = 0x4, offset = 0x4, fixed_abs, tag = 'smem constant byte address 0x4 - core index']
  #allocation1 [shape = 'u32[72,128]{1,0:T(1,128)}', space=vmem, size = 0x9000, scoped, tag = 'internal scratch']
  %s0 = inlined_call_operand.vmem [shape: f32[6,4], index: 0, kind: input, shape index: {}]
  %s1 = inlined_call_operand.vmem [shape: f32[6,4], index: 1, kind: output, shape index: {}]
  %s2 = sld [smem:[#allocation0]]
  $region14: #{tpu_custom_call.1} parent=0
    _
  %s4 = ssub.s32 1, %s2
  %s5 = scalar_select 0, %s4, %s2
  // Predicated region
  $region2: #{tpu_custom_call.1} parent=0 // pred_check
    _
  $region3: #{tpu_custom_call.1} parent=0 // pred_check_branch
    %7 = sbr.rel (0) target = $region5
  $region4: #{tpu_custom_call.1} parent=0 // pred_region
    _
  $region5: #{tpu_custom_call.1} parent=0 // pred_fallthru
    _
  %v8 = vld [vmem:[%s0] sm:$0x3f]
  %vm9 = vcmask 29696
  %10 = vst.msk [vmem:[%s1] sm:$0x3f] %vm9, %v8
  // Predicated region
  $region6: #{tpu_custom_call.1} parent=0 // pred_check
    _
  $region7: #{tpu_custom_call.1} parent=0 // pred_check_branch
    %12 = sbr.rel (0) target = $region9
  $region8: #{tpu_custom_call.1} parent=0 // pred_region
    _
  $region9: #{tpu_custom_call.1} parent=0 // pred_fallthru
    _
  // Predicated region
  $region10: #{tpu_custom_call.1} parent=0 // pred_check
    _
  $region11: #{tpu_custom_call.1} parent=0 // pred_check_branch
    %14 = sbr.rel (0) target = $region13
  $region12: #{tpu_custom_call.1} parent=0 // pred_region
    _
  $region13: #{tpu_custom_call.1} parent=0 // pred_fallthru
    _

</llo_original>
